<compile_context>
chip_gen: v6e
topology: v6e:2x2x1
jax: 0.10.0
libtpu: 0.0.40
codegen_flags: <defaults>
</compile_context>

<pallas_src>
import jax
import jax.numpy as jnp
from jax.experimental import pallas as pl
from jax.experimental.pallas import tpu as pltpu

LANE = 128      # TPU lane width
SUBPACK = 16    # bf16 sublane packing multiple


def _critic_kernel(x_ref, w1_ref, b1_ref, w2_ref, b2_ref, w3_ref, b3_ref, o_ref):
    # x_ref  : (TB, S)  f32/bf16 -- streamed batch tile in natural [B, S] layout
    # w1_ref : (Hp, S)  bf16     -- resident, transposed to (out, in)
    # w2_ref : (Hp, Hp) bf16     -- resident
    # b1/b2  : (Hp, 1)  f32      -- resident bias columns (broadcast along lanes)
    # w3_ref : (Hp, 1)  f32      -- resident head weights (VPU path)
    # b3_ref : (1, 1)   f32      -- SMEM scalar
    # o_ref  : (1, TB)  f32      -- lane-dense output row
    #
    # Put the batch on lanes via an in-kernel XLU transpose (XLU is idle here)
    # instead of materializing x^T with a separate XLA op in the wrapper.
    xT = x_ref[...].astype(jnp.float32).T.astype(jnp.bfloat16)   # (S, TB)

    # Layer 1: (Hp, S) @ (S, TB) -> (Hp, TB), f32 accumulation on the MXU.
    h1 = jnp.dot(w1_ref[...], xT, preferred_element_type=jnp.float32)
    h1 = jnp.maximum(h1 + b1_ref[...], 0.0)        # f32 bias + ReLU (v5e-safe)

    # Layer 2: (Hp, Hp) @ (Hp, TB) -> (Hp, TB).
    h2 = jnp.dot(w2_ref[...], h1.astype(jnp.bfloat16),
                 preferred_element_type=jnp.float32)
    h2 = jnp.maximum(h2 + b2_ref[...], 0.0)

    # Layer 3 (hidden -> 1): VPU multiply + cross-sublane reduce.  Keeps the
    # MXU free and yields a naturally lane-dense (1, TB) result.
    val = jnp.sum(h2 * w3_ref[...], axis=0, keepdims=True)       # (1, TB) f32
    o_ref[...] = (val + b3_ref[0, 0]).astype(o_ref.dtype)


def _pack_params(params, hidden_pad):
    """Transpose to (out, in), zero-pad hidden dims to the bf16 sublane pack,
    and cast the two big matmul weights to bf16.  Zero padding is exact:
    padded hidden units produce relu(0) = 0 and contribute nothing."""
    w1, b1 = params["w1"], params["b1"]   # (S, H), (1, H)
    w2, b2 = params["w2"], params["b2"]   # (H, H), (1, H)
    w3, b3 = params["w3"], params["b3"]   # (H, 1), (1, 1)
    S, H = w1.shape
    Hp = hidden_pad

    w1t = jnp.zeros((Hp, S), jnp.float32).at[:H, :].set(w1.T).astype(jnp.bfloat16)
    b1c = jnp.zeros((Hp, 1), jnp.float32).at[:H, 0].set(b1.reshape(-1))
    w2t = jnp.zeros((Hp, Hp), jnp.float32).at[:H, :H].set(w2.T).astype(jnp.bfloat16)
    b2c = jnp.zeros((Hp, 1), jnp.float32).at[:H, 0].set(b2.reshape(-1))
    w3c = jnp.zeros((Hp, 1), jnp.float32).at[:H, 0].set(w3.reshape(-1))
    b3s = jnp.asarray(b3, jnp.float32).reshape(1, 1)
    return w1t, b1c, w2t, b2c, w3c, b3s


def critic_forward(x, params, *, block_b=1024):
    """x: [B, state_dim] (f32 or bf16); returns [B, 1] float32 value estimates."""
    B, S = x.shape
    H = params["w1"].shape[1]
    # Hidden padded only to the bf16 sublane pack (16), NOT to 128.
    Hp = ((H + SUBPACK - 1) // SUBPACK) * SUBPACK
    w1t, b1c, w2t, b2c, w3c, b3s = _pack_params(params, Hp)

    # Batch tile: large by default to amortize per-grid-step overhead.
    #  - B <= block_b: one block covering the whole batch (full-array block
    #    dims are always legal, no padding, no ragged handling).
    #  - B  > block_b: lane-multiple tile; Pallas masks the ragged last block.
    if B <= block_b:
        block_b = B
    else:
        block_b = max(LANE, (block_b // LANE) * LANE)
    grid = (pl.cdiv(B, block_b),)

    out = pl.pallas_call(
        _critic_kernel,
        out_shape=jax.ShapeDtypeStruct((1, B), jnp.float32),
        grid_spec=pltpu.PrefetchScalarGridSpec(
            num_scalar_prefetch=0,
            grid=grid,
            in_specs=[
                # streamed input tile (software-pipelined across grid steps)
                pl.BlockSpec((block_b, S), lambda i: (i, 0)),
                # resident weights / biases (constant block index -> no re-DMA)
                pl.BlockSpec((Hp, S), lambda i: (0, 0)),
                pl.BlockSpec((Hp, 1), lambda i: (0, 0)),
                pl.BlockSpec((Hp, Hp), lambda i: (0, 0)),
                pl.BlockSpec((Hp, 1), lambda i: (0, 0)),
                pl.BlockSpec((Hp, 1), lambda i: (0, 0)),
                # final bias: single scalar in SMEM
                pl.BlockSpec((1, 1), lambda i: (0, 0),
                             memory_space=pltpu.MemorySpace.SMEM),
            ],
            out_specs=pl.BlockSpec((1, block_b), lambda i: (0, i)),
        ),
        compiler_params=pltpu.CompilerParams(
            dimension_semantics=("parallel",),       # batch axis independent
            vmem_limit_bytes=32 * 1024 * 1024,       # safe on v5e/v6e/v7x
        ),
    )(x, w1t, b1c, w2t, b2c, w3c, b3s)

    return out[0].reshape(B, 1)                      # -> [B, 1]


def init_params(key, state_dim, hidden_dim):
    """PyTorch-style uniform(+/- 1/sqrt(fan_in)) init; weights stored [in, out]."""
    ks = jax.random.split(key, 6)

    def lin(kw, kb, fan_in, fan_out):
        bound = 1.0 / jnp.sqrt(fan_in)
        w = jax.random.uniform(kw, (fan_in, fan_out), jnp.float32, -bound, bound)
        b = jax.random.uniform(kb, (1, fan_out), jnp.float32, -bound, bound)
        return w, b

    w1, b1 = lin(ks[0], ks[1], state_dim, hidden_dim)
    w2, b2 = lin(ks[2], ks[3], hidden_dim, hidden_dim)
    w3, b3 = lin(ks[4], ks[5], hidden_dim, 1)
    return {"w1": w1, "b1": b1, "w2": w2, "b2": b2, "w3": w3, "b3": b3}


def critic_reference(x, params):
    h1 = jnp.maximum(x @ params["w1"] + params["b1"], 0.0)
    h2 = jnp.maximum(h1 @ params["w2"] + params["b2"], 0.0)
    return h2 @ params["w3"] + params["b3"]


if __name__ == "__main__":
    state_dim, hidden_dim, batch = 16, 64, 32

    key = jax.random.PRNGKey(0)
    kx, kp = jax.random.split(key)
    x = jax.random.normal(kx, (batch, state_dim), dtype=jnp.float32)
    params = init_params(kp, state_dim, hidden_dim)

    out = jax.block_until_ready(critic_forward(x, params))
    ref = critic_reference(x, params)

    assert out.shape == (batch, 1)
    max_err = float(jnp.max(jnp.abs(out - ref)))
    # bf16 MXU inputs (f32 accumulation) => relaxed tolerance vs f32 reference.
    assert jnp.allclose(out, ref, atol=2e-2, rtol=2e-2), f"max_err={max_err}"

    print("KERNEL_OK")
</pallas_src>

<mosaic_0001>
module attributes {stable_mosaic.version = 11 : i64} {
  func.func @_critic_kernel(%arg0: i32, %arg1: memref<32x16xf32, #tpu.memory_space<vmem>>, %arg2: memref<64x16xbf16, #tpu.memory_space<vmem>>, %arg3: memref<64x1xf32, #tpu.memory_space<vmem>>, %arg4: memref<64x64xbf16, #tpu.memory_space<vmem>>, %arg5: memref<64x1xf32, #tpu.memory_space<vmem>>, %arg6: memref<64x1xf32, #tpu.memory_space<vmem>>, %arg7: memref<1x1xf32, #tpu.memory_space<smem>>, %arg8: memref<1x32xf32, #tpu.memory_space<vmem>>) attributes {dimension_semantics = [#tpu.dimension_semantics<parallel>], iteration_bounds = array<i64: 1>, scalar_prefetch = 0 : i64, scratch_operands = 0 : i64, tpu.core_type = #tpu.core_type<tc>, window_params = [{transform_indices = @transform_0, window_bounds = array<i64: 32, 16>}, {pipeline_mode = #tpu.pipeline_mode<synchronous>, transform_indices = @transform_1, window_bounds = array<i64: 64, 16>}, {pipeline_mode = #tpu.pipeline_mode<synchronous>, transform_indices = @transform_2, window_bounds = array<i64: 64, 1>}, {pipeline_mode = #tpu.pipeline_mode<synchronous>, transform_indices = @transform_3, window_bounds = array<i64: 64, 64>}, {pipeline_mode = #tpu.pipeline_mode<synchronous>, transform_indices = @transform_4, window_bounds = array<i64: 64, 1>}, {pipeline_mode = #tpu.pipeline_mode<synchronous>, transform_indices = @transform_5, window_bounds = array<i64: 64, 1>}, {transform_indices = @transform_6, window_bounds = array<i64: 1, 1>}, {transform_indices = @transform_7, window_bounds = array<i64: 1, 32>}]} {
    %c0 = arith.constant 0 : index
    %c0_0 = arith.constant 0 : index
    %0 = vector.load %arg1[%c0, %c0_0] : memref<32x16xf32, #tpu.memory_space<vmem>>, vector<32x16xf32>
    %1 = tpu.transpose %0, [1, 0] : vector<32x16xf32> -> vector<16x32xf32>
    %2 = arith.truncf %1 : vector<16x32xf32> to vector<16x32xbf16>
    %c0_1 = arith.constant 0 : index
    %c0_2 = arith.constant 0 : index
    %3 = vector.load %arg2[%c0_1, %c0_2] : memref<64x16xbf16, #tpu.memory_space<vmem>>, vector<64x16xbf16>
    %cst = arith.constant dense<0.000000e+00> : vector<64x32xf32>
    %4 = tpu.matmul %3, %2, %cst {dimension_numbers = #tpu.dot_dimension_numbers<[1], [0], [0], [1], [0, 0, 1, 1], [], []>} : vector<64x16xbf16>, vector<16x32xbf16>, vector<64x32xf32> -> vector<64x32xf32>
    %c0_3 = arith.constant 0 : index
    %c0_4 = arith.constant 0 : index
    %5 = vector.load %arg3[%c0_3, %c0_4] : memref<64x1xf32, #tpu.memory_space<vmem>>, vector<64x1xf32>
    %6 = vector.broadcast %5 : vector<64x1xf32> to vector<64x32xf32>
    %7 = arith.addf %4, %6 : vector<64x32xf32>
    %cst_5 = arith.constant 0.000000e+00 : f32
    %8 = vector.broadcast %cst_5 : f32 to vector<64x32xf32>
    %9 = arith.maximumf %7, %8 : vector<64x32xf32>
    %c0_6 = arith.constant 0 : index
    %c0_7 = arith.constant 0 : index
    %10 = vector.load %arg4[%c0_6, %c0_7] : memref<64x64xbf16, #tpu.memory_space<vmem>>, vector<64x64xbf16>
    %11 = arith.truncf %9 : vector<64x32xf32> to vector<64x32xbf16>
    %cst_8 = arith.constant dense<0.000000e+00> : vector<64x32xf32>
    %12 = tpu.matmul %10, %11, %cst_8 {dimension_numbers = #tpu.dot_dimension_numbers<[1], [0], [0], [1], [0, 0, 1, 1], [], []>} : vector<64x64xbf16>, vector<64x32xbf16>, vector<64x32xf32> -> vector<64x32xf32>
    %c0_9 = arith.constant 0 : index
    %c0_10 = arith.constant 0 : index
    %13 = vector.load %arg5[%c0_9, %c0_10] : memref<64x1xf32, #tpu.memory_space<vmem>>, vector<64x1xf32>
    %14 = vector.broadcast %13 : vector<64x1xf32> to vector<64x32xf32>
    %15 = arith.addf %12, %14 : vector<64x32xf32>
    %cst_11 = arith.constant 0.000000e+00 : f32
    %16 = vector.broadcast %cst_11 : f32 to vector<64x32xf32>
    %17 = arith.maximumf %15, %16 : vector<64x32xf32>
    %c0_12 = arith.constant 0 : index
    %c0_13 = arith.constant 0 : index
    %18 = vector.load %arg6[%c0_12, %c0_13] : memref<64x1xf32, #tpu.memory_space<vmem>>, vector<64x1xf32>
    %19 = vector.broadcast %18 : vector<64x1xf32> to vector<64x32xf32>
    %20 = arith.mulf %17, %19 : vector<64x32xf32>
    %cst_14 = arith.constant dense<0.000000e+00> : vector<32xf32>
    %21 = vector.multi_reduction <add>, %20, %cst_14 [0] : vector<64x32xf32> to vector<32xf32>
    %22 = vector.shape_cast %21 : vector<32xf32> to vector<1x32xf32>
    %c0_15 = arith.constant 0 : index
    %c0_16 = arith.constant 0 : index
    %23 = memref.load %arg7[%c0_15, %c0_16] : memref<1x1xf32, #tpu.memory_space<smem>>
    %24 = vector.broadcast %23 : f32 to vector<1x32xf32>
    %25 = arith.addf %22, %24 : vector<1x32xf32>
    %c0_17 = arith.constant 0 : index
    %c0_18 = arith.constant 0 : index
    %26 = vector.load %arg8[%c0_17, %c0_18] : memref<1x32xf32, #tpu.memory_space<vmem>>, vector<1x32xf32>
    tpu.vector_store %arg8[%c0_17, %c0_18], %25 {strides = array<i32>} : memref<1x32xf32, #tpu.memory_space<vmem>>, vector<1x32xf32>,
    return
  }
  func.func @transform_0(%arg0: i32) -> (i32, i32) {
    %c0_i32 = arith.constant 0 : i32
    %c0_i32_0 = arith.constant 0 : i32
    return %arg0, %c0_i32 : i32, i32
  }
  func.func @transform_1(%arg0: i32) -> (i32, i32) {
    %c0_i32 = arith.constant 0 : i32
    %c0_i32_0 = arith.constant 0 : i32
    %c0_i32_1 = arith.constant 0 : i32
    return %c0_i32, %c0_i32_0 : i32, i32
  }
  func.func @transform_2(%arg0: i32) -> (i32, i32) {
    %c0_i32 = arith.constant 0 : i32
    %c0_i32_0 = arith.constant 0 : i32
    %c0_i32_1 = arith.constant 0 : i32
    return %c0_i32, %c0_i32_0 : i32, i32
  }
  func.func @transform_3(%arg0: i32) -> (i32, i32) {
    %c0_i32 = arith.constant 0 : i32
    %c0_i32_0 = arith.constant 0 : i32
    %c0_i32_1 = arith.constant 0 : i32
    return %c0_i32, %c0_i32_0 : i32, i32
  }
  func.func @transform_4(%arg0: i32) -> (i32, i32) {
    %c0_i32 = arith.constant 0 : i32
    %c0_i32_0 = arith.constant 0 : i32
    %c0_i32_1 = arith.constant 0 : i32
    return %c0_i32, %c0_i32_0 : i32, i32
  }
  func.func @transform_5(%arg0: i32) -> (i32, i32) {
    %c0_i32 = arith.constant 0 : i32
    %c0_i32_0 = arith.constant 0 : i32
    %c0_i32_1 = arith.constant 0 : i32
    return %c0_i32, %c0_i32_0 : i32, i32
  }
  func.func @transform_6(%arg0: i32) -> (i32, i32) {
    %c0_i32 = arith.constant 0 : i32
    %c0_i32_0 = arith.constant 0 : i32
    %c0_i32_1 = arith.constant 0 : i32
    return %c0_i32, %c0_i32_0 : i32, i32
  }
  func.func @transform_7(%arg0: i32) -> (i32, i32) {
    %c0_i32 = arith.constant 0 : i32
    %c0_i32_0 = arith.constant 0 : i32
    return %c0_i32, %arg0 : i32, i32
  }
}

</mosaic_0001>

<llo_original>
// kernel: tpu_custom_call.1
$region0: #{tpu_custom_call.1}
  #allocation0 [shape = 'u32[]', space=smem, size = 0x4, offset = 0x4, fixed_abs, tag = 'smem constant byte address 0x4 - core index']
  #allocation1 [shape = 'u32[144,128]{1,0:T(1,128)}', space=vmem, size = 0x12000, scoped, tag = 'internal scratch']
  #allocation2 [shape = 'f32[1,1]{1,0:T(1,128)S(6)}', space=smem, size = 0x200, scoped, tag = 'scoped memory for tpu_custom_call.1']
  %s0 = inlined_call_operand.vmem [shape: f32[32,16], index: 0, kind: input, shape index: {}]
  %s1 = inlined_call_operand.vmem [shape: bf16[64,16], index: 1, kind: input, shape index: {}]
  %s2 = inlined_call_operand.vmem [shape: f32[64,1], index: 2, kind: input, shape index: {}]
  %s3 = inlined_call_operand.vmem [shape: bf16[64,64], index: 3, kind: input, shape index: {}]
  %s4 = inlined_call_operand.vmem [shape: f32[64,1], index: 4, kind: input, shape index: {}]
  %s5 = inlined_call_operand.vmem [shape: f32[64,1], index: 5, kind: input, shape index: {}]
  %s6 = inlined_call_operand.<no memory space> [shape: f32[1,1], index: 6, kind: input, shape index: {}]
  %s7 = inlined_call_operand.hbm [shape: f32[1,32], index: 7, kind: output, shape index: {}]
  %s8 = sld [smem:[#allocation0]]
  $region38: #{tpu_custom_call.1} parent=0
    _
  %s10 = ssub.s32 1, %s8
  %s11 = scalar_select 0, %s10, %s8
  %12 = sst [smem:[#allocation2]] %s6
  $region1: #{tpu_custom_call.1} parent=0
    #allocation3 [shape = 'u8[512]{0}', space=vmem, size = 0x400, scoped, tag = 'output window, operand 0, single buffered']
    #allocation4 [shape = 's32[1]{0}', space=sflag, size = 0x4, scoped, tag = 'scoped memory for tpu_custom_call.1']
    %13 = vsyncpa [#allocation4], 0
    // Predicated region
    $region2: #{tpu_custom_call.1} parent=1 // pred_check
      _
    $region3: #{tpu_custom_call.1} parent=1 // pred_check_branch
      %15 = sbr.rel (0) target = $region5
    $region4: #{tpu_custom_call.1} parent=1 // pred_region
      _
    $region5: #{tpu_custom_call.1} parent=1 // pred_fallthru
      _
    // Predicated region
    $region6: #{tpu_custom_call.1} parent=1 // pred_check
      _
    $region7: #{tpu_custom_call.1} parent=1 // pred_check_branch
      %17 = sbr.rel (0) target = $region9
    $region8: #{tpu_custom_call.1} parent=1 // pred_region
      _
    $region9: #{tpu_custom_call.1} parent=1 // pred_fallthru
      _
    // Predicated region
    $region10: #{tpu_custom_call.1} parent=1 // pred_check
      _
    $region11: #{tpu_custom_call.1} parent=1 // pred_check_branch
      %19 = sbr.rel (0) target = $region13
    $region12: #{tpu_custom_call.1} parent=1 // pred_region
      _
    $region13: #{tpu_custom_call.1} parent=1 // pred_fallthru
      _
    // Predicated region
    $region14: #{tpu_custom_call.1} parent=1 // pred_check
      _
    $region15: #{tpu_custom_call.1} parent=1 // pred_check_branch
      %21 = sbr.rel (0) target = $region17
    $region16: #{tpu_custom_call.1} parent=1 // pred_region
      _
    $region17: #{tpu_custom_call.1} parent=1 // pred_fallthru
      _
    // Predicated region
    $region18: #{tpu_custom_call.1} parent=1 // pred_check
      _
    $region19: #{tpu_custom_call.1} parent=1 // pred_check_branch
      %23 = sbr.rel (0) target = $region21
    $region20: #{tpu_custom_call.1} parent=1 // pred_region
      _
    $region21: #{tpu_custom_call.1} parent=1 // pred_fallthru
      _
    // Predicated region
    $region22: #{tpu_custom_call.1} parent=1 // pred_check
      _
    $region23: #{tpu_custom_call.1} parent=1 // pred_check_branch
      %25 = sbr.rel (0) target = $region25
    $region24: #{tpu_custom_call.1} parent=1 // pred_region
      _
    $region25: #{tpu_custom_call.1} parent=1 // pred_fallthru
      _
    // Predicated region
    $region26: #{tpu_custom_call.1} parent=1 // pred_check
      _
    $region27: #{tpu_custom_call.1} parent=1 // pred_check_branch
      %27 = sbr.rel (0) target = $region29
    $region28: #{tpu_custom_call.1} parent=1 // pred_region
      _
    $region29: #{tpu_custom_call.1} parent=1 // pred_fallthru
      _
    %v29 = vld [vmem:[%s0] sm:$0xff]
    %v30 = vld [vmem:[%s0 + $0x8] sm:$0xff]
    %v31 = vld [vmem:[%s0 + $0x10] sm:$0xff]
    %v32 = vld [vmem:[%s0 + $0x18] sm:$0xff]
    %33 = vxpose.xlu0.b32.start [1/16] %v29, 128
    %34 = vxpose.xlu0.b32.cont [2/16] %v30, 128
    %35 = vxpose.xlu0.b32.cont [3/16] %v31, 128
    %36 = vxpose.xlu0.b32.cont [4/16] %v32, 128
    %37 = vxpose.xlu0.b32.cont [5/16] 0.0, 128
    %38 = vxpose.xlu0.b32.cont [6/16] 0.0, 128
    %39 = vxpose.xlu0.b32.cont [7/16] 0.0, 128
    %40 = vxpose.xlu0.b32.cont [8/16] 0.0, 128
    %41 = vxpose.xlu0.b32.cont [9/16] 0.0, 128
    %42 = vxpose.xlu0.b32.cont [10/16] 0.0, 128
    %43 = vxpose.xlu0.b32.cont [11/16] 0.0, 128
    %44 = vxpose.xlu0.b32.cont [12/16] 0.0, 128
    %45 = vxpose.xlu0.b32.cont [13/16] 0.0, 128
    %46 = vxpose.xlu0.b32.cont [14/16] 0.0, 128
    %47 = vxpose.xlu0.b32.cont [15/16] 0.0, 128
    %48 = vxpose.xlu0.b32.end [16/16] 0.0, 128
    %v49 = vpop.trf.xlu0
    %v50 = vpop.trf.xlu0
    %v51 = vpop.trf.xlu0
    %v52 = vpop.trf.xlu0
    %v53 = vpop.trf.xlu0
    %v54 = vpop.trf.xlu0
    %v55 = vpop.trf.xlu0
    %v56 = vpop.trf.xlu0
    %v57 = vpop.trf.xlu0
    %v58 = vpop.trf.xlu0
    %v59 = vpop.trf.xlu0
    %v60 = vpop.trf.xlu0
    %v61 = vpop.trf.xlu0
    %v62 = vpop.trf.xlu0
    %v63 = vpop.trf.xlu0
    %v64 = vpop.trf.xlu0
    %v65 = vpack.c.bf16 %v50, %v49
    %v66 = vld [vmem:[%s1] sm:$0xf]
    %v67 = vld [vmem:[%s1 + $0x4] sm:$0xf]
    %v68 = vld [vmem:[%s1 + $0x8] sm:$0xf]
    %v69 = vld [vmem:[%s1 + $0xc] sm:$0xf]
    %v70 = vld [vmem:[%s1 + $0x10] sm:$0xf]
    %v71 = vld [vmem:[%s1 + $0x14] sm:$0xf]
    %v72 = vld [vmem:[%s1 + $0x18] sm:$0xf]
    %v73 = vld [vmem:[%s1 + $0x1c] sm:$0xf]
    %v74 = vld [vmem:[%s2] sm:$0xff]
    %v75 = vld [vmem:[%s2 + $0x8] sm:$0xff]
    %v76 = vld [vmem:[%s2 + $0x10] sm:$0xff]
    %v77 = vld [vmem:[%s2 + $0x18] sm:$0xff]
    %v78 = vld [vmem:[%s2 + $0x20] sm:$0xff]
    %v79 = vld [vmem:[%s2 + $0x28] sm:$0xff]
    %v80 = vld [vmem:[%s2 + $0x30] sm:$0xff]
    %v81 = vld [vmem:[%s2 + $0x38] sm:$0xff]
    %83 = vset.pattern.permute.xlu0 0
    %84 = vperm.xlu0 %83, %v74
    %v85 = vpop.permute.xlu0 %84
    %88 = vset.pattern.permute.xlu0 0
    %89 = vperm.xlu0 %88, %v75
    %v90 = vpop.permute.xlu0 %89
    %93 = vset.pattern.permute.xlu0 0
    %94 = vperm.xlu0 %93, %v76
    %v95 = vpop.permute.xlu0 %94
    %98 = vset.pattern.permute.xlu0 0
    %99 = vperm.xlu0 %98, %v77
    %v100 = vpop.permute.xlu0 %99
    %103 = vset.pattern.permute.xlu0 0
    %104 = vperm.xlu0 %103, %v78
    %v105 = vpop.permute.xlu0 %104
    %108 = vset.pattern.permute.xlu0 0
    %109 = vperm.xlu0 %108, %v79
    %v110 = vpop.permute.xlu0 %109
    %113 = vset.pattern.permute.xlu0 0
    %114 = vperm.xlu0 %113, %v80
    %v115 = vpop.permute.xlu0 %114
    %118 = vset.pattern.permute.xlu0 0
    %119 = vperm.xlu0 %118, %v81
    %v120 = vpop.permute.xlu0 %119
    %v130 = vunpack.c.l.b16 %v66
    %v131 = vunpack.c.l.b16 %v67
    %v132 = vunpack.c.l.b16 %v68
    %v133 = vunpack.c.l.b16 %v69
    %v134 = vunpack.c.l.b16 %v70
    %v135 = vunpack.c.l.b16 %v71
    %v136 = vunpack.c.l.b16 %v72
    %v137 = vunpack.c.l.b16 %v73
    %v138 = vpack.c.b16 %v131, %v130
    %v139 = vpack.c.b16 %v133, %v132
    %v140 = vpack.c.b16 %v135, %v134
    %v141 = vpack.c.b16 %v137, %v136
    %vm142 = vcmask 130048
    %v144 = vsel %vm142, %v138, 0
    %v147 = vsel %vm142, %v139, 0
    %v150 = vsel %vm142, %v140, 0
    %v153 = vsel %vm142, %v141, 0
    %155 = vmatprep.subr.bf16.mxu0 0
    %156 = vmatpush1.bf16.msra.mxu0 0
    %157 = vmatprep.subr.bf16.mxu0 0
    %158 = vmatpush1.bf16.msra.mxu0 0
    %159 = vmatprep.subr.bf16.mxu0 0
    %160 = vmatpush1.bf16.msra.mxu0 0
    %161 = vmatprep.subr.bf16.mxu0 0
    %162 = vmatpush1.bf16.msra.mxu0 0
    %163 = vmatprep.subr.bf16.mxu0 0
    %164 = vmatpush1.bf16.msra.mxu0 0
    %165 = vmatprep.subr.bf16.mxu0 0
    %166 = vmatpush1.bf16.msra.mxu0 0
    %167 = vmatprep.subr.bf16.mxu0 0
    %168 = vmatpush1.bf16.msra.mxu0 0
    %169 = vmatprep.subr.bf16.mxu0 0
    %170 = vmatpush1.bf16.msra.mxu0 %v65
    %171 = vmatprep.subr.bf16.mxu0 0
    %172 = vmatpush2.bf16.msra.mxu0 0
    %173 = vmatprep.subr.bf16.mxu0 0
    %174 = vmatpush2.bf16.msra.mxu0 0
    %175 = vmatprep.subr.bf16.mxu0 0
    %176 = vmatpush2.bf16.msra.mxu0 0
    %177 = vmatprep.subr.bf16.mxu0 0
    %178 = vmatpush2.bf16.msra.mxu0 0
    %179 = vmatprep.subr.bf16.mxu0 0
    %180 = vmatpush2.bf16.msra.mxu0 0
    %181 = vmatprep.subr.bf16.mxu0 0
    %182 = vmatpush2.bf16.msra.mxu0 0
    %183 = vmatprep.subr.bf16.mxu0 0
    %184 = vmatpush2.bf16.msra.mxu0 0
    %185 = vmatprep.subr.bf16.mxu0 0
    %186 = vmatpush2.bf16.msra.mxu0 0
    %187 = vmatprep.mubr.bf16.mxu0 0
    %188 = vmatmul.mubr.bf16.gmra.mxu0 %v144
    %v189 = vpop.f32.mrf.mxu0
    %v190 = vadd.f32 %v85, %v189
    %v191 = vpop.f32.mrf.mxu0
    %v192 = vpop.f32.mrf.mxu0
    %v193 = vadd.f32 %v90, %v192
    %v194 = vpop.f32.mrf.mxu0
    %195 = vmatprep.mubr.bf16.mxu0 0
    %196 = vmatmul.mubr.bf16.gmra.mxu0 %v147
    %v197 = vpop.f32.mrf.mxu0
    %v198 = vadd.f32 %v95, %v197
    %v199 = vpop.f32.mrf.mxu0
    %v200 = vpop.f32.mrf.mxu0
    %v201 = vadd.f32 %v100, %v200
    %v202 = vpop.f32.mrf.mxu0
    %203 = vmatprep.mubr.bf16.mxu0 0
    %204 = vmatmul.mubr.bf16.gmra.mxu0 %v150
    %v205 = vpop.f32.mrf.mxu0
    %v206 = vadd.f32 %v105, %v205
    %v207 = vpop.f32.mrf.mxu0
    %v208 = vpop.f32.mrf.mxu0
    %v209 = vadd.f32 %v110, %v208
    %v210 = vpop.f32.mrf.mxu0
    %211 = vmatprep.mubr.bf16.mxu0 0
    %212 = vmatmul.mubr.bf16.gmra.mxu0 %v153
    %v213 = vpop.f32.mrf.mxu0
    %v214 = vadd.f32 %v115, %v213
    %v215 = vpop.f32.mrf.mxu0
    %v216 = vpop.f32.mrf.mxu0
    %v217 = vadd.f32 %v120, %v216
    %v218 = vpop.f32.mrf.mxu0
    %219 = vdwg.mxu0
    %v220 = vmax.f32 %v190, 0.0
    %v221 = vmax.f32 %v193, 0.0
    %v222 = vmax.f32 %v198, 0.0
    %v223 = vmax.f32 %v201, 0.0
    %v224 = vmax.f32 %v206, 0.0
    %v225 = vmax.f32 %v209, 0.0
    %v226 = vmax.f32 %v214, 0.0
    %v227 = vmax.f32 %v217, 0.0
    %v228 = vld [vmem:[%s3] sm:$0xf]
    %v229 = vld [vmem:[%s3 + $0x4] sm:$0xf]
    %v230 = vld [vmem:[%s3 + $0x8] sm:$0xf]
    %v231 = vld [vmem:[%s3 + $0xc] sm:$0xf]
    %v232 = vld [vmem:[%s3 + $0x10] sm:$0xf]
    %v233 = vld [vmem:[%s3 + $0x14] sm:$0xf]
    %v234 = vld [vmem:[%s3 + $0x18] sm:$0xf]
    %v235 = vld [vmem:[%s3 + $0x1c] sm:$0xf]
    %v236 = vpack.c.bf16 %v221, %v220
    %v237 = vpack.c.bf16 %v223, %v222
    %v238 = vpack.c.bf16 %v225, %v224
    %v239 = vpack.c.bf16 %v227, %v226
    %v240 = vld [vmem:[%s4] sm:$0xff]
    %v241 = vld [vmem:[%s4 + $0x8] sm:$0xff]
    %v242 = vld [vmem:[%s4 + $0x10] sm:$0xff]
    %v243 = vld [vmem:[%s4 + $0x18] sm:$0xff]
    %v244 = vld [vmem:[%s4 + $0x20] sm:$0xff]
    %v245 = vld [vmem:[%s4 + $0x28] sm:$0xff]
    %v246 = vld [vmem:[%s4 + $0x30] sm:$0xff]
    %v247 = vld [vmem:[%s4 + $0x38] sm:$0xff]
    %249 = vset.pattern.permute.xlu0 0
    %250 = vperm.xlu0 %249, %v240
    %v251 = vpop.permute.xlu0 %250
    %254 = vset.pattern.permute.xlu0 0
    %255 = vperm.xlu0 %254, %v241
    %v256 = vpop.permute.xlu0 %255
    %259 = vset.pattern.permute.xlu0 0
    %260 = vperm.xlu0 %259, %v242
    %v261 = vpop.permute.xlu0 %260
    %264 = vset.pattern.permute.xlu0 0
    %265 = vperm.xlu0 %264, %v243
    %v266 = vpop.permute.xlu0 %265
    %269 = vset.pattern.permute.xlu0 0
    %270 = vperm.xlu0 %269, %v244
    %v271 = vpop.permute.xlu0 %270
    %274 = vset.pattern.permute.xlu0 0
    %275 = vperm.xlu0 %274, %v245
    %v276 = vpop.permute.xlu0 %275
    %279 = vset.pattern.permute.xlu0 0
    %280 = vperm.xlu0 %279, %v246
    %v281 = vpop.permute.xlu0 %280
    %284 = vset.pattern.permute.xlu0 0
    %285 = vperm.xlu0 %284, %v247
    %v286 = vpop.permute.xlu0 %285
    %v296 = vunpack.c.l.b16 %v228
    %v297 = vunpack.c.l.b16 %v229
    %v298 = vunpack.c.l.b16 %v230
    %v299 = vunpack.c.l.b16 %v231
    %v300 = vunpack.c.l.b16 %v232
    %v301 = vunpack.c.l.b16 %v233
    %v302 = vunpack.c.l.b16 %v234
    %v303 = vunpack.c.l.b16 %v235
    %v304 = vpack.c.b16 %v297, %v296
    %v305 = vpack.c.b16 %v299, %v298
    %v306 = vpack.c.b16 %v301, %v300
    %v307 = vpack.c.b16 %v303, %v302
    %vm308 = vcmask 523264
    %v310 = vsel %vm308, %v304, 0
    %v313 = vsel %vm308, %v305, 0
    %v316 = vsel %vm308, %v306, 0
    %v319 = vsel %vm308, %v307, 0
    %321 = vmatprep.subr.bf16.mxu0 0
    %322 = vmatpush1.bf16.msra.mxu0 0
    %323 = vmatprep.subr.bf16.mxu0 0
    %324 = vmatpush1.bf16.msra.mxu0 0
    %325 = vmatprep.subr.bf16.mxu0 0
    %326 = vmatpush1.bf16.msra.mxu0 0
    %327 = vmatprep.subr.bf16.mxu0 0
    %328 = vmatpush1.bf16.msra.mxu0 0
    %329 = vmatprep.subr.bf16.mxu0 0
    %330 = vmatpush1.bf16.msra.mxu0 %v239
    %331 = vmatprep.subr.bf16.mxu0 0
    %332 = vmatpush1.bf16.msra.mxu0 %v238
    %333 = vmatprep.subr.bf16.mxu0 0
    %334 = vmatpush1.bf16.msra.mxu0 %v237
    %335 = vmatprep.subr.bf16.mxu0 0
    %336 = vmatpush1.bf16.msra.mxu0 %v236
    %337 = vmatprep.subr.bf16.mxu0 0
    %338 = vmatpush2.bf16.msra.mxu0 0
    %339 = vmatprep.subr.bf16.mxu0 0
    %340 = vmatpush2.bf16.msra.mxu0 0
    %341 = vmatprep.subr.bf16.mxu0 0
    %342 = vmatpush2.bf16.msra.mxu0 0
    %343 = vmatprep.subr.bf16.mxu0 0
    %344 = vmatpush2.bf16.msra.mxu0 0
    %345 = vmatprep.subr.bf16.mxu0 0
    %346 = vmatpush2.bf16.msra.mxu0 0
    %347 = vmatprep.subr.bf16.mxu0 0
    %348 = vmatpush2.bf16.msra.mxu0 0
    %349 = vmatprep.subr.bf16.mxu0 0
    %350 = vmatpush2.bf16.msra.mxu0 0
    %351 = vmatprep.subr.bf16.mxu0 0
    %352 = vmatpush2.bf16.msra.mxu0 0
    %353 = vmatprep.mubr.bf16.mxu0 0
    %354 = vmatmul.mubr.bf16.gmra.mxu0 %v310
    %v355 = vpop.f32.mrf.mxu0
    %v356 = vadd.f32 %v251, %v355
    %v357 = vpop.f32.mrf.mxu0
    %v358 = vpop.f32.mrf.mxu0
    %v359 = vadd.f32 %v256, %v358
    %v360 = vpop.f32.mrf.mxu0
    %361 = vmatprep.mubr.bf16.mxu0 0
    %362 = vmatmul.mubr.bf16.gmra.mxu0 %v313
    %v363 = vpop.f32.mrf.mxu0
    %v364 = vadd.f32 %v261, %v363
    %v365 = vpop.f32.mrf.mxu0
    %v366 = vpop.f32.mrf.mxu0
    %v367 = vadd.f32 %v266, %v366
    %v368 = vpop.f32.mrf.mxu0
    %369 = vmatprep.mubr.bf16.mxu0 0
    %370 = vmatmul.mubr.bf16.gmra.mxu0 %v316
    %v371 = vpop.f32.mrf.mxu0
    %v372 = vadd.f32 %v271, %v371
    %v373 = vpop.f32.mrf.mxu0
    %v374 = vpop.f32.mrf.mxu0
    %v375 = vadd.f32 %v276, %v374
    %v376 = vpop.f32.mrf.mxu0
    %377 = vmatprep.mubr.bf16.mxu0 0
    %378 = vmatmul.mubr.bf16.gmra.mxu0 %v319
    %v379 = vpop.f32.mrf.mxu0
    %v380 = vadd.f32 %v281, %v379
    %v381 = vpop.f32.mrf.mxu0
    %v382 = vpop.f32.mrf.mxu0
    %v383 = vadd.f32 %v286, %v382
    %v384 = vpop.f32.mrf.mxu0
    %385 = vdwg.mxu0
    %v386 = vmax.f32 %v356, 0.0
    %v387 = vmax.f32 %v359, 0.0
    %v388 = vmax.f32 %v364, 0.0
    %v389 = vmax.f32 %v367, 0.0
    %v390 = vmax.f32 %v372, 0.0
    %v391 = vmax.f32 %v375, 0.0
    %v392 = vmax.f32 %v380, 0.0
    %v393 = vmax.f32 %v383, 0.0
    %v394 = vld [vmem:[%s5] sm:$0xff]
    %v395 = vld [vmem:[%s5 + $0x8] sm:$0xff]
    %v396 = vld [vmem:[%s5 + $0x10] sm:$0xff]
    %v397 = vld [vmem:[%s5 + $0x18] sm:$0xff]
    %v398 = vld [vmem:[%s5 + $0x20] sm:$0xff]
    %v399 = vld [vmem:[%s5 + $0x28] sm:$0xff]
    %v400 = vld [vmem:[%s5 + $0x30] sm:$0xff]
    %v401 = vld [vmem:[%s5 + $0x38] sm:$0xff]
    %403 = vset.pattern.permute.xlu0 0
    %404 = vperm.xlu0 %403, %v394
    %v405 = vpop.permute.xlu0 %404
    %408 = vset.pattern.permute.xlu0 0
    %409 = vperm.xlu0 %408, %v395
    %v410 = vpop.permute.xlu0 %409
    %413 = vset.pattern.permute.xlu0 0
    %414 = vperm.xlu0 %413, %v396
    %v415 = vpop.permute.xlu0 %414
    %418 = vset.pattern.permute.xlu0 0
    %419 = vperm.xlu0 %418, %v397
    %v420 = vpop.permute.xlu0 %419
    %423 = vset.pattern.permute.xlu0 0
    %424 = vperm.xlu0 %423, %v398
    %v425 = vpop.permute.xlu0 %424
    %428 = vset.pattern.permute.xlu0 0
    %429 = vperm.xlu0 %428, %v399
    %v430 = vpop.permute.xlu0 %429
    %433 = vset.pattern.permute.xlu0 0
    %434 = vperm.xlu0 %433, %v400
    %v435 = vpop.permute.xlu0 %434
    %438 = vset.pattern.permute.xlu0 0
    %439 = vperm.xlu0 %438, %v401
    %v440 = vpop.permute.xlu0 %439
    %v442 = vmul.f32 %v386, %v405
    %v443 = vmul.f32 %v387, %v410
    %v444 = vmul.f32 %v388, %v415
    %v445 = vmul.f32 %v389, %v420
    %v446 = vmul.f32 %v390, %v425
    %v447 = vmul.f32 %v391, %v430
    %v448 = vmul.f32 %v392, %v435
    %v449 = vmul.f32 %v393, %v440
    %vm450 = vcmask 261120
    %v451 = vsel %vm450, %v442, 0.0
    %v452 = vsel %vm450, %v443, 0.0
    %v453 = vadd.f32 %v451, %v452
    %v454 = vsel %vm450, %v444, 0.0
    %v455 = vadd.f32 %v453, %v454
    %v456 = vsel %vm450, %v445, 0.0
    %v457 = vadd.f32 %v455, %v456
    %v458 = vsel %vm450, %v446, 0.0
    %v459 = vadd.f32 %v457, %v458
    %v460 = vsel %vm450, %v447, 0.0
    %v461 = vadd.f32 %v459, %v460
    %v462 = vsel %vm450, %v448, 0.0
    %v463 = vadd.f32 %v461, %v462
    %v464 = vsel %vm450, %v449, 0.0
    %v465 = vadd.f32 %v463, %v464
    %v466 = vrot.slane %v465, 4
    %v467 = vadd.f32 %v465, %v466
    %v468 = vrot.slane %v467, 2
    %v469 = vadd.f32 %v467, %v468
    %v470 = vrot.slane %v469, 1
    %v471 = vadd.f32 %v469, %v470
    %s472 = sld [smem:[#allocation2]]
    %v473 = vstv %s472
    %v474 = vadd.f32 %v471, %v473
    %vm475 = vcmask 253952
    %476 = vst.msk [vmem:[#allocation3] sm:$0x1] %vm475, %v474
    // Predicated region
    $region30: #{tpu_custom_call.1} parent=1 // pred_check
      _
    $region31: #{tpu_custom_call.1} parent=1 // pred_check_branch
      %478 = sbr.rel (0) target = $region33
    $region32: #{tpu_custom_call.1} parent=1 // pred_region
      %s480 = ssub.s32 16, 16
      %481 = vsyncadd [#allocation4], %s480
      %s483 = sshll.u32 [#allocation3], 4
      %s484 = int_to_ptr.vmem [resolvable:$true] %s483
      %486 = dma.vmem_to_hbm [thread:$0]  %s484, 16, %s7, [#allocation4]
    $region33: #{tpu_custom_call.1} parent=1 // pred_fallthru
      _
    // Predicated region
    $region34: #{tpu_custom_call.1} parent=1 // pred_check
      _
    $region35: #{tpu_custom_call.1} parent=1 // pred_check_branch
      %488 = sbr.rel (0) target = $region37
    $region36: #{tpu_custom_call.1} parent=1 // pred_region
      %489 = dma.done [#allocation4], 16
    $region37: #{tpu_custom_call.1} parent=1 // pred_fallthru
      _
    %490 = vsyncpa [#allocation4], 1

</llo_original>
